<compile_context>
chip_gen: v7x
topology: tpu7x:2x2x1
jax: 0.10.0
libtpu: 0.0.40
codegen_flags: <defaults>
</compile_context>

<pallas_src>
import functools

import jax
import jax.numpy as jnp
from jax import lax
from jax.experimental import pallas as pl
from jax.experimental.pallas import tpu as pltpu

_VMEM_LIMIT = 32 * 1024 * 1024   # ample for the tiles below on every generation


def _block_dim(size, preferred):
    """Full extent for small dims (always a legal block shape), otherwise the
    fixed preferred tile with a cdiv grid (ragged edge handled elsewhere)."""
    return size if size <= preferred else preferred


# -----------------------------------------------------------------------------
# Kernel 1: tiled matmul  out = x @ w (+ bias), bf16 MXU, f32 accumulator
# -----------------------------------------------------------------------------
def _matmul_kernel(x_ref, w_ref, *rest, k_size, k_ragged, has_bias):
    if has_bias:
        bias_ref, o_ref, acc_ref = rest
    else:
        o_ref, acc_ref = rest

    @pl.when(pl.program_id(2) == 0)
    def _():
        if has_bias:
            # bias folded into the accumulator init (no epilogue add)
            acc_ref[...] = jnp.broadcast_to(bias_ref[...], acc_ref.shape)
        else:
            acc_ref[...] = jnp.zeros_like(acc_ref)

    x = x_ref[...]
    w = w_ref[...]
    if k_ragged:
        # Reduction-axis raggedness: zero BOTH operands past K so the padded
        # region contributes exactly 0 to the accumulator.
        kbase = pl.program_id(2) * x_ref.shape[1]
        kx = kbase + lax.broadcasted_iota(jnp.int32, x.shape, 1)
        x = jnp.where(kx < k_size, x, 0.0)
        kw = kbase + lax.broadcasted_iota(jnp.int32, w.shape, 0)
        w = jnp.where(kw < k_size, w, 0.0)

    acc_ref[...] += jnp.dot(x.astype(jnp.bfloat16), w.astype(jnp.bfloat16),
                            preferred_element_type=jnp.float32)

    @pl.when(pl.program_id(2) == pl.num_programs(2) - 1)
    def _():
        o_ref[...] = acc_ref[...].astype(o_ref.dtype)


def matmul(x, w, bias=None, *, block_m=256, block_n=512, block_k=1024):
    """x: (..., K) @ w: (K, N) (+ bias) -> (..., N).  Pallas tiled matmul."""
    orig = x.shape
    K = orig[-1]
    N = w.shape[1]
    x2 = x.reshape(-1, K)
    M = x2.shape[0]

    bm = _block_dim(M, block_m)
    bn = _block_dim(N, block_n)
    bk = _block_dim(K, block_k)
    gm, gn, gk = pl.cdiv(M, bm), pl.cdiv(N, bn), pl.cdiv(K, bk)
    k_ragged = (K % bk) != 0
    has_bias = bias is not None

    in_specs = [pl.BlockSpec((bm, bk), lambda i, j, k: (i, k)),
                pl.BlockSpec((bk, bn), lambda i, j, k: (k, j))]
    args = [x2, w.astype(jnp.bfloat16)]
    if has_bias:
        in_specs.append(pl.BlockSpec((1, bn), lambda i, j, k: (0, j)))
        args.append(bias.reshape(1, N).astype(jnp.float32))

    out = pl.pallas_call(
        functools.partial(_matmul_kernel, k_size=K, k_ragged=k_ragged,
                          has_bias=has_bias),
        out_shape=jax.ShapeDtypeStruct((M, N), x.dtype),
        grid_spec=pltpu.PrefetchScalarGridSpec(
            num_scalar_prefetch=0,
            grid=(gm, gn, gk),
            in_specs=in_specs,
            out_specs=pl.BlockSpec((bm, bn), lambda i, j, k: (i, j)),
            scratch_shapes=[pltpu.VMEM((bm, bn), jnp.float32)]),
        compiler_params=pltpu.CompilerParams(
            dimension_semantics=("parallel", "parallel", "arbitrary"),
            vmem_limit_bytes=_VMEM_LIMIT),
        cost_estimate=pl.CostEstimate(
            flops=2 * M * N * K, transcendentals=0,
            bytes_accessed=M * K * 4 * gn + K * N * 2 * gm + M * N * 4),
    )(*args)
    return out.reshape(orig[:-1] + (N,))


# -----------------------------------------------------------------------------
# Kernel 2: fused LayerNorm + matmul (+bias) -- the PreNorm(Linear) hot path
# -----------------------------------------------------------------------------
def _ln_matmul_kernel(x_ref, g_ref, b_ref, w_ref, *rest, eps, has_bias):
    if has_bias:
        bias_ref, o_ref, y_ref = rest
    else:
        o_ref, y_ref = rest

    # LayerNorm once per row block (j == 0); the bf16 result lives in VMEM
    # scratch and is reused for every N tile of this row block.
    @pl.when(pl.program_id(1) == 0)
    def _():
        x = x_ref[...].astype(jnp.float32)
        mean = jnp.mean(x, axis=-1, keepdims=True)
        xc = x - mean
        var = jnp.mean(xc * xc, axis=-1, keepdims=True)      # biased, like torch
        y = xc * lax.rsqrt(var + eps) * g_ref[...] + b_ref[...]
        y_ref[...] = y.astype(y_ref.dtype)

    acc = jnp.dot(y_ref[...], w_ref[...], preferred_element_type=jnp.float32)
    if has_bias:
        acc = acc + bias_ref[...]
    o_ref[...] = acc.astype(o_ref.dtype)


def ln_matmul(x, gamma, beta, w, bias=None, *, eps=1e-5,
              block_m=256, block_n=512):
    """Fused LayerNorm(last axis) + matmul: Linear(norm(x)) in one pallas_call.

    K (the LN axis) stays unblocked so the statistics are exact in one pass.
    # TODO(synk): for very large K on v7x (64 MiB VMEM), add an inner
    # emit_pipeline over K for the matmul instead of streaming (bm, K) whole.
    """
    orig = x.shape
    K = orig[-1]
    N = w.shape[1]
    x2 = x.reshape(-1, K)
    M = x2.shape[0]

    bm = _block_dim(M, block_m)
    bn = _block_dim(N, block_n)
    gm, gn = pl.cdiv(M, bm), pl.cdiv(N, bn)
    has_bias = bias is not None

    in_specs = [pl.BlockSpec((bm, K), lambda i, j: (i, 0)),
                pl.BlockSpec((1, K), lambda i, j: (0, 0)),
                pl.BlockSpec((1, K), lambda i, j: (0, 0)),
                pl.BlockSpec((K, bn), lambda i, j: (0, j))]
    args = [x2, gamma.reshape(1, K).astype(jnp.float32),
            beta.reshape(1, K).astype(jnp.float32), w.astype(jnp.bfloat16)]
    if has_bias:
        in_specs.append(pl.BlockSpec((1, bn), lambda i, j: (0, j)))
        args.append(bias.reshape(1, N).astype(jnp.float32))

    out = pl.pallas_call(
        functools.partial(_ln_matmul_kernel, eps=eps, has_bias=has_bias),
        out_shape=jax.ShapeDtypeStruct((M, N), x.dtype),
        grid_spec=pltpu.PrefetchScalarGridSpec(
            num_scalar_prefetch=0,
            grid=(gm, gn),
            in_specs=in_specs,
            out_specs=pl.BlockSpec((bm, bn), lambda i, j: (i, j)),
            scratch_shapes=[pltpu.VMEM((bm, K), jnp.bfloat16)]),
        compiler_params=pltpu.CompilerParams(
            # j carries the LN-scratch dependency -> must stay on one core.
            dimension_semantics=("parallel", "arbitrary"),
            vmem_limit_bytes=_VMEM_LIMIT),
        cost_estimate=pl.CostEstimate(
            flops=2 * M * N * K + 8 * M * K, transcendentals=M,
            bytes_accessed=M * K * 4 + K * N * 2 * gm + M * N * 4),
    )(*args)
    return out.reshape(orig[:-1] + (N,))


# -----------------------------------------------------------------------------
# Plain-JAX references with the SAME bf16-weight / f32-accumulate policy, so
# the correctness checks isolate the Pallas tiling / fusion / masking logic.
# -----------------------------------------------------------------------------
def _matmul_ref(x, w, bias=None):
    y = jnp.dot(x.astype(jnp.bfloat16), w.astype(jnp.bfloat16),
                preferred_element_type=jnp.float32)
    if bias is not None:
        y = y + bias.astype(jnp.float32)
    return y.astype(x.dtype)


def _ln_matmul_ref(x, gamma, beta, w, bias=None, *, eps=1e-5):
    x32 = x.astype(jnp.float32)
    mean = jnp.mean(x32, axis=-1, keepdims=True)
    xc = x32 - mean
    var = jnp.mean(xc * xc, axis=-1, keepdims=True)
    y = (xc * lax.rsqrt(var + eps) * gamma + beta).astype(jnp.bfloat16)
    out = jnp.dot(y, w.astype(jnp.bfloat16), preferred_element_type=jnp.float32)
    if bias is not None:
        out = out + bias.astype(jnp.float32)
    return out.astype(x.dtype)


# -----------------------------------------------------------------------------
# Model pieces (all channels-last / NHWC)
# -----------------------------------------------------------------------------
def _depthwise_conv(x_nhwc, w_hwio, b, *, stride=2):
    # TODO(synk): 3x3 stride-2 depthwise conv left to XLA (lax.conv); a Pallas
    # shifted-MAC kernel is possible but not worth it at these sizes.
    out = lax.conv_general_dilated(
        x_nhwc, w_hwio, window_strides=(stride, stride),
        padding=((1, 1), (1, 1)),
        dimension_numbers=("NHWC", "HWIO", "NHWC"),
        feature_group_count=x_nhwc.shape[-1])
    return out + b[None, None, None, :]


def _conv1x1(x_nhwc, w, bias, *, mm):
    # 1x1 conv == per-pixel matmul over channels on a lane-dense (b*h*w, C)
    # slab; NHWC in / NHWC out, no transposes.
    b, hh, ww, c = x_nhwc.shape
    y = mm(x_nhwc.reshape(b * hh * ww, c), w, bias)
    return y.reshape(b, hh, ww, w.shape[1])


def _attention_block(p, x, context, *, mm, lnmm):
    """PreNorm + LMSA attention (talking heads).  The PreNorm is fused into the
    q/kv projections: one ln_matmul over concat([w_q, w_kv]) handles the token
    rows, a plain matmul handles the (un-normalized) context rows."""
    b, n, _ = x.shape
    h = p["mix_pre"].shape[0]
    inner = p["w_q"].shape[1]

    w_qkv = jnp.concatenate([p["w_q"], p["w_kv"]], axis=1)
    qkv_x = lnmm(x, p["ln_g"], p["ln_b"], w_qkv, None)       # fused LN + q/kv
    q = qkv_x[..., :inner]
    kv_x = qkv_x[..., inner:]
    if context is not None:
        kv_ctx = mm(context, p["w_kv"], None)                # context stays raw
        kv = jnp.concatenate([kv_x, kv_ctx], axis=1)
    else:
        kv = kv_x
    k, v = jnp.split(kv, 2, axis=-1)

    def to_heads(t):
        return t.reshape(t.shape[0], t.shape[1], h, -1).transpose(0, 2, 1, 3)

    q, k, v = to_heads(q), to_heads(k), to_heads(v)
    # TODO(synk): talking-heads softmax core kept in jnp (seq lens 1 and 65
    # here); a fused flash-style kernel is not worth it at these sizes.
    dots = jnp.einsum("bhid,bhjd->bhij", q, k) * p["scale"][None, :, None, None]
    dots = dots.at[:, :, :, 0].set(-987654321.0)
    dots = jnp.einsum("bhij,hg->bgij", dots, p["mix_pre"])
    attn = jax.nn.softmax(dots, axis=-1)
    attn = jnp.einsum("bhij,hg->bgij", attn, p["mix_post"])
    o = jnp.einsum("bhij,bhjd->bhid", attn, v)
    o = o.transpose(0, 2, 1, 3).reshape(b, n, -1)
    return mm(o, p["w_out"], p["b_out"])


def _feedforward_block(p, x, *, mm, lnmm):
    h = lnmm(x, p["ln_g"], p["ln_b"], p["w1"], p["b1"])       # fused LN + Linear
    # TODO(synk): exact-erf GELU epilogue not fused into the kernel.
    h = jax.nn.gelu(h, approximate=False)
    return mm(h, p["w2"], p["b2"])


def _affine_grid(theta, hh, ww):
    # F.affine_grid, align_corners=False
    xs = (2.0 * jnp.arange(ww, dtype=jnp.float32) + 1.0) / ww - 1.0
    ys = (2.0 * jnp.arange(hh, dtype=jnp.float32) + 1.0) / hh - 1.0
    gx, gy = jnp.meshgrid(xs, ys)                               # (hh, ww)
    base = jnp.stack([gx, gy, jnp.ones_like(gx)], axis=-1)      # (hh, ww, 3)
    return jnp.einsum("hwk,nik->nhwi", base, theta)             # (n, hh, ww, 2)


def _grid_sample(x, grid):
    """F.grid_sample (bilinear, padding_mode='zeros', align_corners=False) on a
    channels-last tensor.  The gather is expressed as a per-batch
    (HW_out x HW_in) interpolation matrix applied with a batched matmul so it
    runs on the MXU instead of XLA's scalar gather path.
    # TODO(synk): for large images the one-hot matrix is quadratic in HW; a
    # Pallas manual-DMA gather kernel would be the scalable replacement.
    """
    n, hh, ww, c = x.shape
    p = hh * ww
    ix = ((grid[..., 0] + 1.0) * ww - 1.0) * 0.5
    iy = ((grid[..., 1] + 1.0) * hh - 1.0) * 0.5
    ix0, iy0 = jnp.floor(ix), jnp.floor(iy)
    ix1, iy1 = ix0 + 1.0, iy0 + 1.0
    wx1, wy1 = ix - ix0, iy - iy0
    wx0, wy0 = 1.0 - wx1, 1.0 - wy1
    cols = jnp.arange(p, dtype=jnp.int32)[None, None, :]

    def corner(ixn, iyn, wgt):
        valid = (ixn >= 0) & (ixn <= ww - 1) & (iyn >= 0) & (iyn <= hh - 1)
        ixc = jnp.clip(ixn, 0, ww - 1).astype(jnp.int32)
        iyc = jnp.clip(iyn, 0, hh - 1).astype(jnp.int32)
        flat = (iyc * ww + ixc).reshape(n, p)
        wv = (wgt * valid.astype(wgt.dtype)).reshape(n, p)
        return (flat[:, :, None] == cols).astype(x.dtype) * wv[:, :, None]

    wmat = (corner(ix0, iy0, wx0 * wy0) + corner(ix1, iy0, wx1 * wy0)
            + corner(ix0, iy1, wx0 * wy1) + corner(ix1, iy1, wx1 * wy1))
    out = jnp.einsum("npq,nqc->npc", wmat, x.reshape(n, p, c),
                     precision=lax.Precision.HIGHEST)
    return out.reshape(n, hh, ww, c)


def _grid_sample_gather(x, grid):
    """Gather-based grid_sample (NHWC); used only to verify _grid_sample."""
    n, hh, ww, c = x.shape
    ix = ((grid[..., 0] + 1.0) * ww - 1.0) * 0.5
    iy = ((grid[..., 1] + 1.0) * hh - 1.0) * 0.5
    ix0, iy0 = jnp.floor(ix), jnp.floor(iy)
    ix1, iy1 = ix0 + 1.0, iy0 + 1.0
    wx1, wy1 = ix - ix0, iy - iy0
    wx0, wy0 = 1.0 - wx1, 1.0 - wy1
    b_idx = jnp.arange(n)[:, None, None]

    def gather(ixn, iyn):
        valid = (ixn >= 0) & (ixn <= ww - 1) & (iyn >= 0) & (iyn <= hh - 1)
        ixc = jnp.clip(ixn, 0, ww - 1).astype(jnp.int32)
        iyc = jnp.clip(iyn, 0, hh - 1).astype(jnp.int32)
        vals = x[b_idx, iyc, ixc, :]
        return vals * valid[..., None].astype(x.dtype)

    return (gather(ix0, iy0) * (wx0 * wy0)[..., None]
            + gather(ix1, iy0) * (wx1 * wy0)[..., None]
            + gather(ix0, iy1) * (wx0 * wy1)[..., None]
            + gather(ix1, iy1) * (wx1 * wy1)[..., None])


def _affine(x_nhwc, theta, init, scale=None):
    if scale is not None:
        theta = theta * scale
    b = x_nhwc.shape[0]
    init_b = jnp.broadcast_to(init.reshape(1, 2, 3), (b, 2, 3))
    theta = theta.reshape(b, 2, 3) + init_b
    grid = _affine_grid(theta, x_nhwc.shape[1], x_nhwc.shape[2])
    return _grid_sample(x_nhwc, grid), theta


# -----------------------------------------------------------------------------
# AffineNet forward
# -----------------------------------------------------------------------------
def affine_net_forward(params, param_token, x, init, scale=None,
                       *, n_trans=4, use_pallas=True):
    mm = matmul if use_pallas else _matmul_ref
    lnmm = ln_matmul if use_pallas else _ln_matmul_ref

    b = x.shape[0]
    x = jnp.transpose(x, (0, 2, 3, 1))      # NCHW -> NHWC once, then stay NHWC
    _, hh, ww, c = x.shape
    pt = jnp.broadcast_to(param_token, (b,) + param_token.shape[1:])

    # depth_wise_conv + 'b c h w -> b (h w) c'  (NHWC: plain reshape)
    ctx = _depthwise_conv(x, params["dw_w"], params["dw_b"], stride=2)
    ctx = ctx.reshape(b, -1, c)

    # param_transformer (PreNorm attention / PreNorm feedforward, residual)
    y = pt
    for layer in params["layers"]:
        y = _attention_block(layer["attn"], y, ctx, mm=mm, lnmm=lnmm) + y
        y = _feedforward_block(layer["ff"], y, mm=mm, lnmm=lnmm) + y

    # mlp_head on the param token (fused LayerNorm + Linear)
    param = lnmm(y[:, 0], params["head_ln_g"], params["head_ln_b"],
                 params["head_w"], params["head_b"])
    param_list = jnp.split(param, n_trans, axis=-1)

    # pre_linear (1x1 conv), chunk along channels, affine-warp each chunk
    xc = _conv1x1(x, params["pre_w"], params["pre_b"], mm=mm)
    chunks = jnp.split(xc, n_trans, axis=-1)

    outs, thetas = [], []
    for i in range(n_trans):
        sc = None if scale is None else scale[i]
        o, th = _affine(chunks[i], param_list[i], init[i], sc)
        outs.append(o)
        thetas.append(th)

    out = jnp.concatenate(outs, axis=-1)                       # channels last
    out = _conv1x1(out, params["post_w"], params["post_b"], mm=mm)
    out = out.reshape(b, hh * ww, -1)                          # 'b (h w) d'
    return out, thetas


# -----------------------------------------------------------------------------
# Deterministic parameter init
# -----------------------------------------------------------------------------
def init_params(key, *, in_dim, hidden_dim, heads, depth, n_trans):
    dim_head = in_dim // heads
    inner = dim_head * heads
    kit = iter(jax.random.split(key, 64))

    def nrm(shape, s=0.05):
        return jax.random.normal(next(kit), shape, jnp.float32) * s

    layers = []
    for _ in range(depth):
        attn = dict(
            ln_g=jnp.ones((in_dim,), jnp.float32),
            ln_b=jnp.zeros((in_dim,), jnp.float32),
            w_q=nrm((in_dim, inner)),
            w_kv=nrm((in_dim, 2 * inner)),
            mix_pre=nrm((heads, heads), 1.0),
            mix_post=nrm((heads, heads), 1.0),
            scale=jnp.full((heads,), dim_head ** -0.5, jnp.float32),
            w_out=nrm((inner, in_dim)),
            b_out=nrm((in_dim,)),
        )
        ff = dict(
            ln_g=jnp.ones((in_dim,), jnp.float32),
            ln_b=jnp.zeros((in_dim,), jnp.float32),
            w1=nrm((in_dim, in_dim)),
            b1=nrm((in_dim,)),
            w2=nrm((in_dim, in_dim)),
            b2=nrm((in_dim,)),
        )
        layers.append(dict(attn=attn, ff=ff))

    return dict(
        dw_w=nrm((3, 3, 1, in_dim), 0.2),       # depthwise 3x3, HWIO layout
        dw_b=nrm((in_dim,)),
        layers=layers,
        head_ln_g=jnp.ones((in_dim,), jnp.float32),
        head_ln_b=jnp.zeros((in_dim,), jnp.float32),
        head_w=nrm((in_dim, 6 * n_trans), 0.02),
        head_b=nrm((6 * n_trans,), 0.02),
        pre_w=nrm((in_dim, hidden_dim)),
        pre_b=nrm((hidden_dim,)),
        post_w=nrm((hidden_dim, in_dim)),
        post_b=nrm((in_dim,)),
    )


if __name__ == "__main__":
    B, IN_DIM, HIDDEN, HEADS, DEPTH, N_TRANS = 2, 32, 32, 4, 1, 4
    H = W = 16

    keys = jax.random.split(jax.random.PRNGKey(0), 16)
    params = init_params(keys[0], in_dim=IN_DIM, hidden_dim=HIDDEN,
                         heads=HEADS, depth=DEPTH, n_trans=N_TRANS)
    x = jax.random.normal(keys[1], (B, IN_DIM, H, W), jnp.float32)
    param_token = jax.random.normal(keys[2], (1, 1, IN_DIM), jnp.float32) * 0.5
    init = jnp.tile(jnp.array([[1.0, 0.0, 0.0], [0.0, 1.0, 0.0]],
                              jnp.float32)[None], (N_TRANS, 1, 1))

    # ---- unit check 1: ragged tiled matmul (M, N and masked K all ragged) ----
    a = jax.random.normal(keys[3], (17, 300), jnp.float32)
    bmat = jax.random.normal(keys[4], (300, 200), jnp.float32) * 0.05
    bvec = jax.random.normal(keys[5], (200,), jnp.float32) * 0.1
    got = matmul(a, bmat, bvec, block_m=8, block_n=128, block_k=128)
    want = _matmul_ref(a, bmat, bvec)
    assert bool(jnp.allclose(got, want, atol=1e-2, rtol=1e-2)), \
        float(jnp.max(jnp.abs(got - want)))

    # ---- unit check 2: fused LN+matmul, LN-scratch reuse across N tiles ----
    xl = jax.random.normal(keys[6], (17, 160), jnp.float32)
    g = 1.0 + 0.1 * jax.random.normal(keys[7], (160,), jnp.float32)
    bta = 0.1 * jax.random.normal(keys[8], (160,), jnp.float32)
    wl = 0.05 * jax.random.normal(keys[9], (160, 300), jnp.float32)
    bl = 0.1 * jax.random.normal(keys[10], (300,), jnp.float32)
    got = ln_matmul(xl, g, bta, wl, bl, block_m=8, block_n=128)
    want = _ln_matmul_ref(xl, g, bta, wl, bl)
    assert bool(jnp.allclose(got, want, atol=1e-2, rtol=1e-2)), \
        float(jnp.max(jnp.abs(got - want)))

    # ---- unit check 3: one-hot-matmul grid_sample == gather grid_sample ----
    xs = jax.random.normal(keys[11], (2, 16, 16, 8), jnp.float32)
    th = (jnp.tile(jnp.array([[1.0, 0.0, 0.0], [0.0, 1.0, 0.0]],
                             jnp.float32)[None], (2, 1, 1))
          + 0.1 * jax.random.normal(keys[12], (2, 2, 3), jnp.float32))
    gtest = _affine_grid(th, 16, 16)
    d = jnp.max(jnp.abs(_grid_sample(xs, gtest) - _grid_sample_gather(xs, gtest)))
    assert bool(d < 1e-3), float(d)

    # ---- end-to-end: Pallas path vs same-math jnp reference path ----
    fwd = jax.jit(functools.partial(affine_net_forward, n_trans=N_TRANS,
                                    use_pallas=True))
    ref_fwd = jax.jit(functools.partial(affine_net_forward, n_trans=N_TRANS,
                                        use_pallas=False))
    out, thetas = fwd(params, param_token, x, init)
    out = jax.block_until_ready(out)
    ref, _ = ref_fwd(params, param_token, x, init)
    ref = jax.block_until_ready(ref)

    assert out.shape == (B, H * W, IN_DIM), out.shape
    assert len(thetas) == N_TRANS and thetas[0].shape == (B, 2, 3)
    assert bool(jnp.all(jnp.isfinite(out)))
    # The jnp reference applies the same bf16-weight / f32-accumulate policy as
    # the kernels, so this isolates the Pallas tiling / fusion / masking logic.
    assert bool(jnp.allclose(out, ref, atol=2e-2, rtol=2e-2)), \
        float(jnp.max(jnp.abs(out - ref)))

    print("KERNEL_OK")
</pallas_src>

<mosaic_0001>
module attributes {stable_mosaic.version = 11 : i64} {
  func.func @_matmul_kernel(%arg0: i32, %arg1: i32, %arg2: i32, %arg3: memref<8x128xf32, #tpu.memory_space<vmem>>, %arg4: memref<128x128xbf16, #tpu.memory_space<vmem>>, %arg5: memref<1x128xf32, #tpu.memory_space<vmem>>, %arg6: memref<8x128xf32, #tpu.memory_space<vmem>>, %arg7: memref<8x128xf32, #tpu.memory_space<vmem>>) attributes {dimension_semantics = [#tpu.dimension_semantics<parallel>, #tpu.dimension_semantics<parallel>, #tpu.dimension_semantics<arbitrary>], iteration_bounds = array<i64: 3, 2, 3>, scalar_prefetch = 0 : i64, scratch_operands = 1 : i64, tpu.core_type = #tpu.core_type<tc>, window_params = [{transform_indices = @transform_0, window_bounds = array<i64: 8, 128>}, {transform_indices = @transform_1, window_bounds = array<i64: 128, 128>}, {transform_indices = @transform_2, window_bounds = array<i64: 1, 128>}, {transform_indices = @transform_3, window_bounds = array<i64: 8, 128>}]} {
    %c0_i32 = arith.constant 0 : i32
    %0 = arith.cmpi eq, %arg2, %c0_i32 : i32
    %1 = arith.extui %0 : i1 to i32
    %c0_i32_0 = arith.constant 0 : i32
    %2 = arith.cmpi ne, %1, %c0_i32_0 : i32
    scf.if %2 {
      %c0_12 = arith.constant 0 : index
      %c0_13 = arith.constant 0 : index
      %29 = vector.load %arg5[%c0_12, %c0_13] : memref<1x128xf32, #tpu.memory_space<vmem>>, vector<1x128xf32>
      %30 = vector.shape_cast %29 : vector<1x128xf32> to vector<1x128xf32>
      %31 = vector.broadcast %30 : vector<1x128xf32> to vector<8x128xf32>
      %c0_14 = arith.constant 0 : index
      %c0_15 = arith.constant 0 : index
      %32 = vector.load %arg7[%c0_14, %c0_15] : memref<8x128xf32, #tpu.memory_space<vmem>>, vector<8x128xf32>
      tpu.vector_store %arg7[%c0_14, %c0_15], %31 {strides = array<i32>} : memref<8x128xf32, #tpu.memory_space<vmem>>, vector<8x128xf32>,
    } else {
    }
    %c0 = arith.constant 0 : index
    %c0_1 = arith.constant 0 : index
    %3 = vector.load %arg3[%c0, %c0_1] : memref<8x128xf32, #tpu.memory_space<vmem>>, vector<8x128xf32>
    %c0_2 = arith.constant 0 : index
    %c0_3 = arith.constant 0 : index
    %4 = vector.load %arg4[%c0_2, %c0_3] : memref<128x128xbf16, #tpu.memory_space<vmem>>, vector<128x128xbf16>
    %c128_i32 = arith.constant 128 : i32
    %5 = arith.muli %arg2, %c128_i32 : i32
    %6 = tpu.iota {dimensions = array<i32: 1>} : vector<8x128xi32>
    %7 = vector.broadcast %5 : i32 to vector<8x128xi32>
    %8 = arith.addi %7, %6 : vector<8x128xi32>
    %c300_i32 = arith.constant 300 : i32
    %9 = vector.broadcast %c300_i32 : i32 to vector<8x128xi32>
    %10 = arith.cmpi slt, %8, %9 : vector<8x128xi32>
    %cst = arith.constant 0.000000e+00 : f32
    %11 = vector.broadcast %cst : f32 to vector<8x128xf32>
    %12 = arith.select %10, %3, %11 : vector<8x128xi1>, vector<8x128xf32>
    %13 = tpu.iota {dimensions = array<i32: 0>} : vector<128x128xi32>
    %14 = vector.broadcast %5 : i32 to vector<128x128xi32>
    %15 = arith.addi %14, %13 : vector<128x128xi32>
    %c300_i32_4 = arith.constant 300 : i32
    %16 = vector.broadcast %c300_i32_4 : i32 to vector<128x128xi32>
    %17 = arith.cmpi slt, %15, %16 : vector<128x128xi32>
    %cst_5 = arith.constant 0.000000e+00 : f32
    %18 = arith.truncf %cst_5 : f32 to bf16
    %19 = vector.broadcast %18 : bf16 to vector<128x128xbf16>
    %20 = arith.select %17, %4, %19 : vector<128x128xi1>, vector<128x128xbf16>
    %c0_6 = arith.constant 0 : index
    %c0_7 = arith.constant 0 : index
    %21 = vector.load %arg7[%c0_6, %c0_7] : memref<8x128xf32, #tpu.memory_space<vmem>>, vector<8x128xf32>
    %22 = arith.truncf %12 : vector<8x128xf32> to vector<8x128xbf16>
    %cst_8 = arith.constant dense<0.000000e+00> : vector<8x128xf32>
    %23 = tpu.matmul %22, %20, %cst_8 {dimension_numbers = #tpu.dot_dimension_numbers<[1], [0], [0], [1], [0, 0, 1, 1], [], []>} : vector<8x128xbf16>, vector<128x128xbf16>, vector<8x128xf32> -> vector<8x128xf32>
    %24 = arith.addf %21, %23 : vector<8x128xf32>
    %c0_9 = arith.constant 0 : index
    %c0_10 = arith.constant 0 : index
    %25 = vector.load %arg7[%c0_9, %c0_10] : memref<8x128xf32, #tpu.memory_space<vmem>>, vector<8x128xf32>
    tpu.vector_store %arg7[%c0_9, %c0_10], %24 {strides = array<i32>} : memref<8x128xf32, #tpu.memory_space<vmem>>, vector<8x128xf32>,
    %c2_i32 = arith.constant 2 : i32
    %26 = arith.cmpi eq, %arg2, %c2_i32 : i32
    %27 = arith.extui %26 : i1 to i32
    %c0_i32_11 = arith.constant 0 : i32
    %28 = arith.cmpi ne, %27, %c0_i32_11 : i32
    scf.if %28 {
      %c0_12 = arith.constant 0 : index
      %c0_13 = arith.constant 0 : index
      %29 = vector.load %arg7[%c0_12, %c0_13] : memref<8x128xf32, #tpu.memory_space<vmem>>, vector<8x128xf32>
      %c0_14 = arith.constant 0 : index
      %c0_15 = arith.constant 0 : index
      %30 = vector.load %arg6[%c0_14, %c0_15] : memref<8x128xf32, #tpu.memory_space<vmem>>, vector<8x128xf32>
      tpu.vector_store %arg6[%c0_14, %c0_15], %29 {strides = array<i32>} : memref<8x128xf32, #tpu.memory_space<vmem>>, vector<8x128xf32>,
    } else {
    }
    return
  }
  func.func @transform_0(%arg0: i32, %arg1: i32, %arg2: i32) -> (i32, i32) {
    %c0_i32 = arith.constant 0 : i32
    return %arg0, %arg2 : i32, i32
  }
  func.func @transform_1(%arg0: i32, %arg1: i32, %arg2: i32) -> (i32, i32) {
    %c0_i32 = arith.constant 0 : i32
    return %arg2, %arg1 : i32, i32
  }
  func.func @transform_2(%arg0: i32, %arg1: i32, %arg2: i32) -> (i32, i32) {
    %c0_i32 = arith.constant 0 : i32
    %c0_i32_0 = arith.constant 0 : i32
    return %c0_i32, %arg1 : i32, i32
  }
  func.func @transform_3(%arg0: i32, %arg1: i32, %arg2: i32) -> (i32, i32) {
    %c0_i32 = arith.constant 0 : i32
    return %arg0, %arg1 : i32, i32
  }
}

</mosaic_0001>

<llo_original>
// kernel: tpu_custom_call.1
$region0: #{tpu_custom_call.1}
  #allocation0 [shape = 'u32[]', space=smem, size = 0x4, offset = 0x4, fixed_abs, tag = 'smem constant byte address 0x4 - core index']
  #allocation1 [shape = 'u32[144,128]{1,0:T(1,128)}', space=vmem, size = 0x12000, scoped, tag = 'internal scratch']
  #allocation2 [shape = 'f32[8,128]{1,0:T(8,128)}', space=vmem, size = 0x1000, scoped, tag = 'scratch operand']
  %s0 = inlined_call_operand.vmem [shape: f32[17,300], index: 0, kind: input, shape index: {}]
  %s1 = inlined_call_operand.vmem [shape: bf16[300,200], index: 1, kind: input, shape index: {}]
  %s2 = inlined_call_operand.vmem [shape: f32[1,200], index: 2, kind: input, shape index: {}]
  %s3 = inlined_call_operand.hbm [shape: f32[17,200], index: 3, kind: output, shape index: {}]
  %s4 = sld [smem:[#allocation0]]
  $region101: #{tpu_custom_call.1} parent=0
    _
  %s6 = ssub.s32 1, %s4
  %s7 = scalar_select 0, %s6, %s4
  $region1: #{tpu_custom_call.1} parent=0
    #allocation3 [shape = 'u8[65536]{0}', space=vmem, size = 0x10000, scoped, tag = 'input window, operand 1']
    #allocation4 [shape = 'u8[8192]{0}', space=vmem, size = 0x2000, scoped, tag = 'output window, operand 0']
    #allocation5 [shape = 's32[2]{0}', space=sflag, size = 0x8, scoped, tag = 'scoped memory for tpu_custom_call.1']
    %8 = vsyncpa [#allocation5], 0
    %s9 = scalar_lea.sflag [#allocation5], 1
    %10 = vsyncpa %s9, 0
    loop: start=0, step=1, limit=20
    $region2: #{tpu_custom_call.1} parent=1 // loop_pre_header
      _
    $region3: #{tpu_custom_call.1} parent=1 // loop_header
      %s12 = sphi 0, %s16
      %p13 = scmp.ge.s32.totalorder %s12, 20
      %s19 = sphi 0, %s38
      %s20 = sphi 0, %s34
      %s21 = sphi 0, %s30
      %s22 = sphi 0, %s19
      %s23 = sphi 0, %s20
      %s24 = sphi 0, %s21
      %s25 = sphi 0, %s22
      %s26 = sphi 0, %s23
      %s27 = sphi 0, %s24
      %s43 = sphi 0, %s45
      %s46 = sphi 0, %s43
      %s47 = sphi 0, %s46
      %s63 = sphi 0, %s47
      %s71 = sphi 0, %s73
      %s74 = sphi 0, %s71
      %s75 = sphi 0, %s74
      %s91 = sphi 0, %s75
      %s97 = sphi 0, %s99
      %s100 = sphi 0, %s97
      %s101 = sphi 0, %s100
      %s117 = sphi 0, %s101
      %s125 = sphi 0, %s127
      %s128 = sphi 0, %s125
      %s129 = sphi 0, %s128
      %s145 = sphi 0, %s129
    $region4: #{tpu_custom_call.1} parent=1 // loop_header_branch
      %15 = sbr.rel (%p13) target = $region8
    $region5: #{tpu_custom_call.1} parent=1 // loop_body
      %s17 = ssub.s32 %s12, 1
      %s18 = ssub.s32 %s12, 2
      %s28 = sadd.s32 1, %s21
      %p29 = scmp.ge.s32.totalorder %s28, 3
      %s30 = scalar_select %p29, 0, %s28
      %s31 = sadd.s32 1, %s20
      %s32 = scalar_select %p29, %s31, %s20
      %p33 = scmp.ge.s32.totalorder %s32, 2
      %s34 = scalar_select %p33, 0, %s32
      %s35 = sadd.s32 1, %s19
      %s36 = scalar_select %p33, %s35, %s19
      %p37 = scmp.ge.s32.totalorder %s36, 3
      %s38 = scalar_select %p37, 0, %s36
      %s39 = ssub.s32 %s19, %s38
      %s40 = ssub.s32 %s21, %s30
      %s41 = sor.u32 %s39, %s40
      %p42 = scmp.eq.s32.totalorder %s41, 0
      %s44 = sadd.s32 %s43, 1
      %s45 = scalar_select %p42, %s43, %s44
      %p48 = pneg %p42
      %p49 = scmp.eq.s32.totalorder %s12, 17
      %p50 = por %p48, %p49
      %p51 = scmp.ne.s32.totalorder %s43, %s46
      %p52 = scmp.eq.s32.totalorder %s12, 0
      %p53 = por %p51, %p52
      %p54 = scmp.ne.s32.totalorder %s43, %s46
      %p55 = scmp.eq.s32.totalorder %s17, 17
      %p56 = por %p54, %p55
      %p57 = scmp.ne.s32.totalorder %s46, %s47
      %p58 = scmp.eq.s32.totalorder %s17, 0
      %p59 = por %p57, %p58
      %p60 = scmp.ne.s32.totalorder %s46, %s47
      %p61 = scmp.eq.s32.totalorder %s18, 17
      %p62 = por %p60, %p61
      %p64 = scmp.ne.s32.totalorder %s47, %s63
      %p65 = scmp.eq.s32.totalorder %s18, 0
      %p66 = por %p64, %p65
      %s67 = ssub.s32 %s21, %s30
      %s68 = ssub.s32 %s20, %s34
      %s69 = sor.u32 %s67, %s68
      %p70 = scmp.eq.s32.totalorder %s69, 0
      %s72 = sadd.s32 %s71, 1
      %s73 = scalar_select %p70, %s71, %s72
      %p76 = pneg %p70
      %p77 = scmp.eq.s32.totalorder %s12, 17
      %p78 = por %p76, %p77
      %p79 = scmp.ne.s32.totalorder %s71, %s74
      %p80 = scmp.eq.s32.totalorder %s12, 0
      %p81 = por %p79, %p80
      %p82 = scmp.ne.s32.totalorder %s71, %s74
      %p83 = scmp.eq.s32.totalorder %s17, 17
      %p84 = por %p82, %p83
      %p85 = scmp.ne.s32.totalorder %s74, %s75
      %p86 = scmp.eq.s32.totalorder %s17, 0
      %p87 = por %p85, %p86
      %p88 = scmp.ne.s32.totalorder %s74, %s75
      %p89 = scmp.eq.s32.totalorder %s18, 17
      %p90 = por %p88, %p89
      %p92 = scmp.ne.s32.totalorder %s75, %s91
      %p93 = scmp.eq.s32.totalorder %s18, 0
      %p94 = por %p92, %p93
      %s95 = ssub.s32 %s20, %s34
      %p96 = scmp.eq.s32.totalorder %s95, 0
      %s98 = sadd.s32 %s97, 1
      %s99 = scalar_select %p96, %s97, %s98
      %p102 = pneg %p96
      %p103 = scmp.eq.s32.totalorder %s12, 17
      %p104 = por %p102, %p103
      %p105 = scmp.ne.s32.totalorder %s97, %s100
      %p106 = scmp.eq.s32.totalorder %s12, 0
      %p107 = por %p105, %p106
      %p108 = scmp.ne.s32.totalorder %s97, %s100
      %p109 = scmp.eq.s32.totalorder %s17, 17
      %p110 = por %p108, %p109
      %p111 = scmp.ne.s32.totalorder %s100, %s101
      %p112 = scmp.eq.s32.totalorder %s17, 0
      %p113 = por %p111, %p112
      %p114 = scmp.ne.s32.totalorder %s100, %s101
      %p115 = scmp.eq.s32.totalorder %s18, 17
      %p116 = por %p114, %p115
      %p118 = scmp.ne.s32.totalorder %s101, %s117
      %p119 = scmp.eq.s32.totalorder %s18, 0
      %p120 = por %p118, %p119
      %s121 = ssub.s32 %s19, %s38
      %s122 = ssub.s32 %s20, %s34
      %s123 = sor.u32 %s121, %s122
      %p124 = scmp.eq.s32.totalorder %s123, 0
      %s126 = sadd.s32 %s125, 1
      %s127 = scalar_select %p124, %s125, %s126
      %p130 = pneg %p124
      %p131 = scmp.eq.s32.totalorder %s12, 17
      %p132 = por %p130, %p131
      %p133 = scmp.ne.s32.totalorder %s125, %s128
      %p134 = scmp.eq.s32.totalorder %s12, 0
      %p135 = por %p133, %p134
      %p136 = scmp.ne.s32.totalorder %s125, %s128
      %p137 = scmp.eq.s32.totalorder %s17, 17
      %p138 = por %p136, %p137
      %p139 = scmp.ne.s32.totalorder %s128, %s129
      %p140 = scmp.eq.s32.totalorder %s17, 0
      %p141 = por %p139, %p140
      %p142 = scmp.ne.s32.totalorder %s128, %s129
      %p143 = scmp.eq.s32.totalorder %s18, 17
      %p144 = por %p142, %p143
      %p146 = scmp.ne.s32.totalorder %s129, %s145
      %p147 = scmp.eq.s32.totalorder %s18, 0
      %p148 = por %p146, %p147
      %p149 = scmp.le.s32.totalorder 1, %s12
      %p150 = scmp.lt.s32.totalorder %s12, 19
      %p151 = pnand %p149, %p150
      %p152 = pneg %p151
      // Predicated region
      $region9: #{tpu_custom_call.1} parent=5 // pred_check
        _
      $region10: #{tpu_custom_call.1} parent=5 // pred_check_branch
        %154 = sbr.rel (%p151) target = $region12
      $region11: #{tpu_custom_call.1} parent=5 // pred_region
        %s155 = ssub.s32 %s12, 1
      $region12: #{tpu_custom_call.1} parent=5 // pred_fallthru
        _
      %p156 = scmp.lt.s32.totalorder %s12, 18
      // Predicated region
      $region13: #{tpu_custom_call.1} parent=5 // pred_check
        %p157 = pneg %p156
      $region14: #{tpu_custom_call.1} parent=5 // pred_check_branch
        %159 = sbr.rel (%p157) target = $region16
      $region15: #{tpu_custom_call.1} parent=5 // pred_region
        // Predicated region
        $region17: #{tpu_custom_call.1} parent=15 // pred_check
          %p160 = pneg %p53
        $region18: #{tpu_custom_call.1} parent=15 // pred_check_branch
          %162 = sbr.rel (%p160) target = $region20
        $region19: #{tpu_custom_call.1} parent=15 // pred_region
          %p163 = scmp.lt.s32.totalorder %s19, 2
          %s164 = scalar_select %p163, %s19, 2
          %p165 = scmp.lt.s32.totalorder %s21, 2
          %s166 = scalar_select %p165, %s21, 2
          %s167 = smul.addr %s164, 3
          %s168 = sadd.s32 %s166, %s167
          %s169 = smul.addr %s168, 8
          %s170 = scalar_lea.vmem %s0, %s169
        $region20: #{tpu_custom_call.1} parent=15 // pred_fallthru
          _
        // Predicated region
        $region21: #{tpu_custom_call.1} parent=15 // pred_check
          %p171 = pneg %p81
        $region22: #{tpu_custom_call.1} parent=15 // pred_check_branch
          %173 = sbr.rel (%p171) target = $region24
        $region23: #{tpu_custom_call.1} parent=15 // pred_region
          %s174 = sand.u32 %s71, 1
          %s175 = sand.u32 %s71, 1
          %s176 = smul.addr %s175, 64
          %s177 = scalar_lea.vmem [#allocation3], %s176
          %s178 = smul.u32 16, %s21
          %s179 = ssub.s32 38, %s178
          %p180 = scmp.lt.s32.totalorder %s179, 16
          %s181 = scalar_select %p180, %s179, 16
          %s182 = smul.u32 64, %s181
          %p183 = scmp.ne.s32.totalorder 0, %s182
          %s184 = smul.addr %s178, 2
          %s185 = sadd.s32 %s20, %s184
          %s186 = smul.addr %s185, 4
          %s187 = scalar_lea.vmem %s1, %s186
          // Predicated region
          $region25: #{tpu_custom_call.1} parent=23 // pred_check
            %p188 = pneg %p183
          $region26: #{tpu_custom_call.1} parent=23 // pred_check_branch
            %190 = sbr.rel (%p188) target = $region28
          $region27: #{tpu_custom_call.1} parent=23 // pred_region
            // Predicated region
            $region29: #{tpu_custom_call.1} parent=27 // pred_check
              _
            $region30: #{tpu_custom_call.1} parent=27 // pred_check_branch
              %192 = sbr.rel target = $region32
            $region31: #{tpu_custom_call.1} parent=27 // pred_region
              // Predicated region
              $region51: #{tpu_custom_call.1} parent=31 // pred_check
                _
              $region52: #{tpu_custom_call.1} parent=31 // pred_check_branch
                %271 = sbr.rel (0) target = $region54
              $region53: #{tpu_custom_call.1} parent=31 // pred_region
                %s273 = sshrl.u32 %s181, 4
                // While loop
                $region55: #{tpu_custom_call.1} parent=53 // loop_pre_header
                  _
                $region56: #{tpu_custom_call.1} parent=53 // loop_header
                  %s275 = sphi 0, %s277
                  %p276 = scmp.ge.s32.totalorder %s275, %s273
                  %s280 = sphi 0, %s317
                  %s281 = sphi %s187, %s320
                  %s282 = sphi %s177, %s321
                $region57: #{tpu_custom_call.1} parent=53 // loop_header_branch
                  %279 = sbr.rel (%p276) target = $region61
                $region58: #{tpu_custom_call.1} parent=53 // loop_body
                  %v283 = vld [vmem:[%s281] sm:$0xf]
                  %284 = vst [vmem:[%s282] sm:$0xf] %v283
                  %v285 = vld [vmem:[%s281 + $0x8] sm:$0xf]
                  %286 = vst [vmem:[%s282 + $0x4] sm:$0xf] %v285
                  %v287 = vld [vmem:[%s281 + $0x10] sm:$0xf]
                  %288 = vst [vmem:[%s282 + $0x8] sm:$0xf] %v287
                  %v289 = vld [vmem:[%s281 + $0x18] sm:$0xf]
                  %290 = vst [vmem:[%s282 + $0xc] sm:$0xf] %v289
                  %v291 = vld [vmem:[%s281 + $0x20] sm:$0xf]
                  %292 = vst [vmem:[%s282 + $0x10] sm:$0xf] %v291
                  %v293 = vld [vmem:[%s281 + $0x28] sm:$0xf]
                  %294 = vst [vmem:[%s282 + $0x14] sm:$0xf] %v293
                  %v295 = vld [vmem:[%s281 + $0x30] sm:$0xf]
                  %296 = vst [vmem:[%s282 + $0x18] sm:$0xf] %v295
                  %v297 = vld [vmem:[%s281 + $0x38] sm:$0xf]
                  %298 = vst [vmem:[%s282 + $0x1c] sm:$0xf] %v297
                  %v299 = vld [vmem:[%s281 + $0x40] sm:$0xf]
                  %300 = vst [vmem:[%s282 + $0x20] sm:$0xf] %v299
                  %v301 = vld [vmem:[%s281 + $0x48] sm:$0xf]
                  %302 = vst [vmem:[%s282 + $0x24] sm:$0xf] %v301
                  %v303 = vld [vmem:[%s281 + $0x50] sm:$0xf]
                  %304 = vst [vmem:[%s282 + $0x28] sm:$0xf] %v303
                  %v305 = vld [vmem:[%s281 + $0x58] sm:$0xf]
                  %306 = vst [vmem:[%s282 + $0x2c] sm:$0xf] %v305
                  %v307 = vld [vmem:[%s281 + $0x60] sm:$0xf]
                  %308 = vst [vmem:[%s282 + $0x30] sm:$0xf] %v307
                  %v309 = vld [vmem:[%s281 + $0x68] sm:$0xf]
                  %310 = vst [vmem:[%s282 + $0x34] sm:$0xf] %v309
                  %v311 = vld [vmem:[%s281 + $0x70] sm:$0xf]
                  %312 = vst [vmem:[%s282 + $0x38] sm:$0xf] %v311
                  %v313 = vld [vmem:[%s281 + $0x78] sm:$0xf]
                  %314 = vst [vmem:[%s282 + $0x3c] sm:$0xf] %v313
                  %s315 = sadd.s32 1, %s280
                  %p316 = scmp.ge.s32.totalorder %s315, %s273
                  %s317 = scalar_select %p316, 0, %s315
                  %s318 = smul.u32 %s317, 128
                  %s319 = smul.u32 %s317, 64
                  %s320 = scalar_lea.vmem %s187, %s318
                  %s321 = scalar_lea.vmem %s177, %s319 [#allocation3]
                $region59: #{tpu_custom_call.1} parent=53 // loop_footer
                  %s277 = sadd.s32 %s275, 1
                $region60: #{tpu_custom_call.1} parent=53 // loop_footer_branch
                  %274 = sbr.rel target = $region56
                $region61: #{tpu_custom_call.1} parent=53 // loop_exit
                  _
                %s322 = sshrl.u32 %s181, 4
                %s323 = sand.u32 %s181, 15
                %s324 = smul.u32 %s322, 16
                %s325 = smul.u32 8, %s324
                %s326 = scalar_lea.vmem %s187, %s325
                %s327 = smul.u32 4, %s324
                %s328 = scalar_lea.vmem %s177, %s327 [#allocation3]
                // While loop
                $region62: #{tpu_custom_call.1} parent=53 // loop_pre_header
                  _
                $region63: #{tpu_custom_call.1} parent=53 // loop_header
                  %s330 = sphi 0, %s332
                  %p331 = scmp.ge.s32.totalorder %s330, %s323
                  %s335 = sphi 0, %s342
                  %s336 = sphi %s326, %s345
                  %s337 = sphi %s328, %s346
                $region64: #{tpu_custom_call.1} parent=53 // loop_header_branch
                  %334 = sbr.rel (%p331) target = $region68
                $region65: #{tpu_custom_call.1} parent=53 // loop_body
                  %v338 = vld [vmem:[%s336] sm:$0xf]
                  %339 = vst [vmem:[%s337] sm:$0xf] %v338
                  %s340 = sadd.s32 1, %s335
                  %p341 = scmp.ge.s32.totalorder %s340, %s323
                  %s342 = scalar_select %p341, 0, %s340
                  %s343 = smul.u32 %s342, 8
                  %s344 = smul.u32 %s342, 4
                  %s345 = scalar_lea.vmem %s326, %s343
                  %s346 = scalar_lea.vmem %s328, %s344 [#allocation3]
                $region66: #{tpu_custom_call.1} parent=53 // loop_footer
                  %s332 = sadd.s32 %s330, 1
                $region67: #{tpu_custom_call.1} parent=53 // loop_footer_branch
                  %329 = sbr.rel target = $region63
                $region68: #{tpu_custom_call.1} parent=53 // loop_exit
                  _
              $region54: #{tpu_custom_call.1} parent=31 // pred_fallthru
                _
            $region32: #{tpu_custom_call.1} parent=27 // pred_fallthru
              _
            // Predicated region
            $region33: #{tpu_custom_call.1} parent=27 // pred_check
              _
            $region34: #{tpu_custom_call.1} parent=27 // pred_check_branch
              %194 = sbr.rel (0) target = $region36
            $region35: #{tpu_custom_call.1} parent=27 // pred_region
              %s196 = sshrl.u32 %s181, 4
              // While loop
              $region37: #{tpu_custom_call.1} parent=35 // loop_pre_header
                _
              $region38: #{tpu_custom_call.1} parent=35 // loop_header
                %s198 = sphi 0, %s200
                %p199 = scmp.ge.s32.totalorder %s198, %s196
                %s203 = sphi 0, %s240
                %s204 = sphi %s187, %s243
                %s205 = sphi %s177, %s244
              $region39: #{tpu_custom_call.1} parent=35 // loop_header_branch
                %202 = sbr.rel (%p199) target = $region43
              $region40: #{tpu_custom_call.1} parent=35 // loop_body
                %v206 = vld [vmem:[%s204] sm:$0xf]
                %207 = vst [vmem:[%s205] sm:$0xf] %v206
                %v208 = vld [vmem:[%s204 + $0x8] sm:$0xf]
                %209 = vst [vmem:[%s205 + $0x4] sm:$0xf] %v208
                %v210 = vld [vmem:[%s204 + $0x10] sm:$0xf]
                %211 = vst [vmem:[%s205 + $0x8] sm:$0xf] %v210
                %v212 = vld [vmem:[%s204 + $0x18] sm:$0xf]
                %213 = vst [vmem:[%s205 + $0xc] sm:$0xf] %v212
                %v214 = vld [vmem:[%s204 + $0x20] sm:$0xf]
                %215 = vst [vmem:[%s205 + $0x10] sm:$0xf] %v214
                %v216 = vld [vmem:[%s204 + $0x28] sm:$0xf]
                %217 = vst [vmem:[%s205 + $0x14] sm:$0xf] %v216
                %v218 = vld [vmem:[%s204 + $0x30] sm:$0xf]
                %219 = vst [vmem:[%s205 + $0x18] sm:$0xf] %v218
                %v220 = vld [vmem:[%s204 + $0x38] sm:$0xf]
                %221 = vst [vmem:[%s205 + $0x1c] sm:$0xf] %v220
                %v222 = vld [vmem:[%s204 + $0x40] sm:$0xf]
                %223 = vst [vmem:[%s205 + $0x20] sm:$0xf] %v222
                %v224 = vld [vmem:[%s204 + $0x48] sm:$0xf]
                %225 = vst [vmem:[%s205 + $0x24] sm:$0xf] %v224
                %v226 = vld [vmem:[%s204 + $0x50] sm:$0xf]
                %227 = vst [vmem:[%s205 + $0x28] sm:$0xf] %v226
                %v228 = vld [vmem:[%s204 + $0x58] sm:$0xf]
                %229 = vst [vmem:[%s205 + $0x2c] sm:$0xf] %v228
                %v230 = vld [vmem:[%s204 + $0x60] sm:$0xf]
                %231 = vst [vmem:[%s205 + $0x30] sm:$0xf] %v230
                %v232 = vld [vmem:[%s204 + $0x68] sm:$0xf]
                %233 = vst [vmem:[%s205 + $0x34] sm:$0xf] %v232
                %v234 = vld [vmem:[%s204 + $0x70] sm:$0xf]
                %235 = vst [vmem:[%s205 + $0x38] sm:$0xf] %v234
                %v236 = vld [vmem:[%s204 + $0x78] sm:$0xf]
                %237 = vst [vmem:[%s205 + $0x3c] sm:$0xf] %v236
                %s238 = sadd.s32 1, %s203
                %p239 = scmp.ge.s32.totalorder %s238, %s196
                %s240 = scalar_select %p239, 0, %s238
                %s241 = smul.u32 %s240, 128
                %s242 = smul.u32 %s240, 64
                %s243 = scalar_lea.vmem %s187, %s241
                %s244 = scalar_lea.vmem %s177, %s242 [#allocation3]
              $region41: #{tpu_custom_call.1} parent=35 // loop_footer
                %s200 = sadd.s32 %s198, 1
              $region42: #{tpu_custom_call.1} parent=35 // loop_footer_branch
                %197 = sbr.rel target = $region38
              $region43: #{tpu_custom_call.1} parent=35 // loop_exit
                _
              %s245 = sshrl.u32 %s181, 4
              %s246 = sand.u32 %s181, 15
              %s247 = smul.u32 %s245, 16
              %s248 = smul.u32 8, %s247
              %s249 = scalar_lea.vmem %s187, %s248
              %s250 = smul.u32 4, %s247
              %s251 = scalar_lea.vmem %s177, %s250 [#allocation3]
              // While loop
              $region44: #{tpu_custom_call.1} parent=35 // loop_pre_header
                _
              $region45: #{tpu_custom_call.1} parent=35 // loop_header
                %s253 = sphi 0, %s255
                %p254 = scmp.ge.s32.totalorder %s253, %s246
                %s258 = sphi 0, %s265
                %s259 = sphi %s249, %s268
                %s260 = sphi %s251, %s269
              $region46: #{tpu_custom_call.1} parent=35 // loop_header_branch
                %257 = sbr.rel (%p254) target = $region50
              $region47: #{tpu_custom_call.1} parent=35 // loop_body
                %v261 = vld [vmem:[%s259] sm:$0xf]
                %262 = vst [vmem:[%s260] sm:$0xf] %v261
                %s263 = sadd.s32 1, %s258
                %p264 = scmp.ge.s32.totalorder %s263, %s246
                %s265 = scalar_select %p264, 0, %s263
                %s266 = smul.u32 %s265, 8
                %s267 = smul.u32 %s265, 4
                %s268 = scalar_lea.vmem %s249, %s266
                %s269 = scalar_lea.vmem %s251, %s267 [#allocation3]
              $region48: #{tpu_custom_call.1} parent=35 // loop_footer
                %s255 = sadd.s32 %s253, 1
              $region49: #{tpu_custom_call.1} parent=35 // loop_footer_branch
                %252 = sbr.rel target = $region45
              $region50: #{tpu_custom_call.1} parent=35 // loop_exit
                _
            $region36: #{tpu_custom_call.1} parent=27 // pred_fallthru
              _
          $region28: #{tpu_custom_call.1} parent=23 // pred_fallthru
            _
          %347 = vnop
        $region24: #{tpu_custom_call.1} parent=15 // pred_fallthru
          _
        // Predicated region
        $region69: #{tpu_custom_call.1} parent=15 // pred_check
          %p348 = pneg %p107
        $region70: #{tpu_custom_call.1} parent=15 // pred_check_branch
          %350 = sbr.rel (%p348) target = $region72
        $region71: #{tpu_custom_call.1} parent=15 // pred_region
          %p351 = scmp.lt.s32.totalorder %s20, 1
          %s352 = scalar_select %p351, %s20, 1
          %s353 = scalar_lea.vmem %s2, %s352
        $region72: #{tpu_custom_call.1} parent=15 // pred_fallthru
          _
      $region16: #{tpu_custom_call.1} parent=5 // pred_fallthru
        _
      %p354 = scmp.le.s32.totalorder 1, %s12
      %p355 = scmp.lt.s32.totalorder %s12, 19
      %p356 = pnand %p354, %p355
      %p357 = pneg %p356
      // Predicated region
      $region73: #{tpu_custom_call.1} parent=5 // pred_check
        _
      $region74: #{tpu_custom_call.1} parent=5 // pred_check_branch
        %359 = sbr.rel (%p356) target = $region76
      $region75: #{tpu_custom_call.1} parent=5 // pred_region
        %s360 = ssub.s32 %s12, 1
        %s361 = sand.u32 %s74, 1
        %s362 = sand.u32 %s74, 1
        %s363 = smul.addr %s362, 64
        %s364 = scalar_lea.vmem [#allocation3], %s363
        // Predicated region
        $region77: #{tpu_custom_call.1} parent=75 // pred_check
          %p365 = pneg %p87
        $region78: #{tpu_custom_call.1} parent=75 // pred_check_branch
          %367 = sbr.rel (%p365) target = $region80
        $region79: #{tpu_custom_call.1} parent=75 // pred_region
          _
        $region80: #{tpu_custom_call.1} parent=75 // pred_fallthru
          _
        %p368 = scmp.lt.s32.totalorder %s22, 2
        %s369 = scalar_select %p368, %s22, 2
        %p370 = scmp.lt.s32.totalorder %s24, 2
        %s371 = scalar_select %p370, %s24, 2
        %s372 = smul.addr %s369, 3
        %s373 = sadd.s32 %s371, %s372
        %s374 = smul.addr %s373, 8
        %s375 = scalar_lea.vmem %s0, %s374
        %p376 = pneg %p59
        %p377 = pneg %p56
        %s378 = sand.u32 %s74, 1
        %s379 = sand.u32 %s74, 1
        %s380 = smul.addr %s379, 64
        %s381 = scalar_lea.vmem [#allocation3], %s380
        %p382 = pneg %p87
        %p383 = pneg %p84
        %p384 = scmp.lt.s32.totalorder %s23, 1
        %s385 = scalar_select %p384, %s23, 1
        %s386 = scalar_lea.vmem %s2, %s385
        %p387 = pneg %p113
        %p388 = pneg %p110
        %p389 = pneg %p141
        %p390 = pneg %p138
        %s391 = sand.u32 %s128, 1
        %s392 = scalar_lea.sflag [#allocation5], %s391
        %s393 = sand.u32 %s128, 1
        %s394 = smul.addr %s393, 8
        %s395 = scalar_lea.vmem [#allocation4], %s394
        %p396 = scmp.lt.s32.totalorder %s22, 2
        %s397 = scalar_select %p396, %s22, 2
        %p398 = scmp.lt.s32.totalorder %s24, 2
        %s399 = scalar_select %p398, %s24, 2
        %s400 = smul.addr %s397, 3
        %s401 = sadd.s32 %s399, %s400
        %s402 = smul.addr %s401, 8
        %s403 = scalar_lea.vmem %s0, %s402
        %s404 = smul.u32 16, %s24
        %s405 = ssub.s32 38, %s404
        %p406 = scmp.lt.s32.totalorder %s405, 16
        %s407 = scalar_select %p406, %s405, 16
        %s408 = smul.u32 64, %s407
        %p409 = scmp.lt.s32.totalorder %s23, 1
        %s410 = scalar_select %p409, %s23, 1
        %s411 = scalar_lea.vmem %s2, %s410
        %p413 = scmp.eq.s32.totalorder %s24, 0
        // Predicated region
        $region81: #{tpu_custom_call.1} parent=75 // pred_check
          %p414 = pneg %p413
        $region82: #{tpu_custom_call.1} parent=75 // pred_check_branch
          %416 = sbr.rel (%p414) target = $region84
        $region83: #{tpu_custom_call.1} parent=75 // pred_region
          %v417 = vld [vmem:[%s411] sm:$0x1]
          %v419 = vlaneseq
          %v420 = vshrl.u32 %v419, 7
          %v421 = vsub.s32 0, %v420
          %v422 = vrot.slane %v417, %v421
          %424 = vst [vmem:[#allocation2] sm:$0xff] %v422
        $region84: #{tpu_custom_call.1} parent=75 // pred_fallthru
          _
        %v425 = vld [vmem:[%s403] sm:$0xff]
        %v426 = vld [vmem:[%s364] sm:$0xf]
        %v427 = vld [vmem:[%s364 + $0x4] sm:$0xf]
        %v428 = vld [vmem:[%s364 + $0x8] sm:$0xf]
        %v429 = vld [vmem:[%s364 + $0xc] sm:$0xf]
        %v430 = vld [vmem:[%s364 + $0x10] sm:$0xf]
        %v431 = vld [vmem:[%s364 + $0x14] sm:$0xf]
        %v432 = vld [vmem:[%s364 + $0x18] sm:$0xf]
        %v433 = vld [vmem:[%s364 + $0x1c] sm:$0xf]
        %v434 = vld [vmem:[%s364 + $0x20] sm:$0xf]
        %v435 = vld [vmem:[%s364 + $0x24] sm:$0xf]
        %v436 = vld [vmem:[%s364 + $0x28] sm:$0xf]
        %v437 = vld [vmem:[%s364 + $0x2c] sm:$0xf]
        %v438 = vld [vmem:[%s364 + $0x30] sm:$0xf]
        %v439 = vld [vmem:[%s364 + $0x34] sm:$0xf]
        %v440 = vld [vmem:[%s364 + $0x38] sm:$0xf]
        %v441 = vld [vmem:[%s364 + $0x3c] sm:$0xf]
        %s442 = smul.u32 %s24, 128
        %v443 = vlaneseq
        %v444 = vand.u32 %v443, 127
        %v445 = vstv %s442
        %v446 = vadd.s32 %v445, %v444
        %vm447 = vcmp.lt.s32.totalorder %v446, 300
        %v448 = vsel %vm447, %v425, 0.0
        %v449 = vlaneseq
        %v450 = vshrl.u32 %v449, 7
        %v451 = vadd.s32 %v450, 8
        %v452 = vadd.s32 %v450, 16
        %v453 = vadd.s32 %v450, 24
        %v454 = vadd.s32 %v450, 32
        %v455 = vadd.s32 %v450, 40
        %v456 = vadd.s32 %v450, 48
        %v457 = vadd.s32 %v450, 56
        %v458 = vadd.s32 %v450, 64
        %v459 = vadd.s32 %v450, 72
        %v460 = vadd.s32 %v450, 80
        %v461 = vadd.s32 %v450, 88
        %v462 = vadd.s32 %v450, 96
        %v463 = vadd.s32 %v450, 104
        %v464 = vadd.s32 %v450, 112
        %v465 = vadd.s32 %v450, 120
        %v466 = vadd.s32 %v445, %v450
        %v467 = vadd.s32 %v445, %v451
        %v468 = vadd.s32 %v445, %v452
        %v469 = vadd.s32 %v445, %v453
        %v470 = vadd.s32 %v445, %v454
        %v471 = vadd.s32 %v445, %v455
        %v472 = vadd.s32 %v445, %v456
        %v473 = vadd.s32 %v445, %v457
        %v474 = vadd.s32 %v445, %v458
        %v475 = vadd.s32 %v445, %v459
        %v476 = vadd.s32 %v445, %v460
        %v477 = vadd.s32 %v445, %v461
        %v478 = vadd.s32 %v445, %v462
        %v479 = vadd.s32 %v445, %v463
        %v480 = vadd.s32 %v445, %v464
        %v481 = vadd.s32 %v445, %v465
        %vm482 = vcmp.lt.s32.totalorder %v466, 300
        %vm483 = vcmp.lt.s32.totalorder %v467, 300
        %vm484 = vcmp.lt.s32.totalorder %v468, 300
        %vm485 = vcmp.lt.s32.totalorder %v469, 300
        %vm486 = vcmp.lt.s32.totalorder %v470, 300
        %vm487 = vcmp.lt.s32.totalorder %v471, 300
        %vm488 = vcmp.lt.s32.totalorder %v472, 300
        %vm489 = vcmp.lt.s32.totalorder %v473, 300
        %vm490 = vcmp.lt.s32.totalorder %v474, 300
        %vm491 = vcmp.lt.s32.totalorder %v475, 300
        %vm492 = vcmp.lt.s32.totalorder %v476, 300
        %vm493 = vcmp.lt.s32.totalorder %v477, 300
        %vm494 = vcmp.lt.s32.totalorder %v478, 300
        %vm495 = vcmp.lt.s32.totalorder %v479, 300
        %vm496 = vcmp.lt.s32.totalorder %v480, 300
        %vm497 = vcmp.lt.s32.totalorder %v481, 300
        %vm498 = vmpackc.low %vm482, %vm482
        %vm499 = vmpackc.low %vm483, %vm483
        %vm500 = vmpackc.low %vm484, %vm484
        %vm501 = vmpackc.low %vm485, %vm485
        %vm502 = vmpackc.low %vm486, %vm486
        %vm503 = vmpackc.low %vm487, %vm487
        %vm504 = vmpackc.low %vm488, %vm488
        %vm505 = vmpackc.low %vm489, %vm489
        %vm506 = vmpackc.low %vm490, %vm490
        %vm507 = vmpackc.low %vm491, %vm491
        %vm508 = vmpackc.low %vm492, %vm492
        %vm509 = vmpackc.low %vm493, %vm493
        %vm510 = vmpackc.low %vm494, %vm494
        %vm511 = vmpackc.low %vm495, %vm495
        %vm512 = vmpackc.low %vm496, %vm496
        %vm513 = vmpackc.low %vm497, %vm497
        %v514 = vsel %vm498, %v426, 0
        %v515 = vsel %vm499, %v427, 0
        %v516 = vsel %vm500, %v428, 0
        %v517 = vsel %vm501, %v429, 0
        %v518 = vsel %vm502, %v430, 0
        %v519 = vsel %vm503, %v431, 0
        %v520 = vsel %vm504, %v432, 0
        %v521 = vsel %vm505, %v433, 0
        %v522 = vsel %vm506, %v434, 0
        %v523 = vsel %vm507, %v435, 0
        %v524 = vsel %vm508, %v436, 0
        %v525 = vsel %vm509, %v437, 0
        %v526 = vsel %vm510, %v438, 0
        %v527 = vsel %vm511, %v439, 0
        %v528 = vsel %vm512, %v440, 0
        %v529 = vsel %vm513, %v441, 0
        %v530 = vld [vmem:[#allocation2] sm:$0xff]
        %v531 = vpack.c.bf16 %v448, %v448
        %v548 = vunpack.c.l.b16 %v514
        %v549 = vunpack.c.l.b16 %v515
        %v550 = vunpack.c.l.b16 %v516
        %v551 = vunpack.c.l.b16 %v517
        %v552 = vunpack.c.l.b16 %v518
        %v553 = vunpack.c.l.b16 %v519
        %v554 = vunpack.c.l.b16 %v520
        %v555 = vunpack.c.l.b16 %v521
        %v556 = vunpack.c.l.b16 %v522
        %v557 = vunpack.c.l.b16 %v523
        %v558 = vunpack.c.l.b16 %v524
        %v559 = vunpack.c.l.b16 %v525
        %v560 = vunpack.c.l.b16 %v526
        %v561 = vunpack.c.l.b16 %v527
        %v562 = vunpack.c.l.b16 %v528
        %v563 = vunpack.c.l.b16 %v529
        %v564 = vpack.c.b16 %v549, %v548
        %v565 = vpack.c.b16 %v551, %v550
        %v566 = vpack.c.b16 %v553, %v552
        %v567 = vpack.c.b16 %v555, %v554
        %v568 = vpack.c.b16 %v557, %v556
        %v569 = vpack.c.b16 %v559, %v558
        %v570 = vpack.c.b16 %v561, %v560
        %v571 = vpack.c.b16 %v563, %v562
        %580 = vmatprep.subr.bf16.mxu0 0
        %581 = vmatpush1.bf16.msra.mxu0 %v564
        %582 = vmatprep.subr.bf16.mxu0 0
        %583 = vmatpush1.bf16.msra.mxu0 %v565
        %584 = vmatprep.subr.bf16.mxu0 0
        %585 = vmatpush1.bf16.msra.mxu0 %v566
        %586 = vmatprep.subr.bf16.mxu0 0
        %587 = vmatpush1.bf16.msra.mxu0 %v567
        %588 = vmatprep.subr.bf16.mxu0 0
        %589 = vmatpush1.bf16.msra.mxu0 %v568
        %590 = vmatprep.subr.bf16.mxu0 0
        %591 = vmatpush1.bf16.msra.mxu0 %v569
        %592 = vmatprep.subr.bf16.mxu0 0
        %593 = vmatpush1.bf16.msra.mxu0 %v570
        %594 = vmatprep.subr.bf16.mxu0 0
        %595 = vmatpush1.bf16.msra.mxu0 %v571
        %596 = vmatprep.subr.bf16.mxu0 0
        %597 = vmatpush1.bf16.msra.mxu0 0
        %598 = vmatprep.subr.bf16.mxu0 0
        %599 = vmatpush1.bf16.msra.mxu0 0
        %600 = vmatprep.subr.bf16.mxu0 0
        %601 = vmatpush1.bf16.msra.mxu0 0
        %602 = vmatprep.subr.bf16.mxu0 0
        %603 = vmatpush1.bf16.msra.mxu0 0
        %604 = vmatprep.subr.bf16.mxu0 0
        %605 = vmatpush1.bf16.msra.mxu0 0
        %606 = vmatprep.subr.bf16.mxu0 0
        %607 = vmatpush1.bf16.msra.mxu0 0
        %608 = vmatprep.subr.bf16.mxu0 0
        %609 = vmatpush1.bf16.msra.mxu0 0
        %610 = vmatprep.subr.bf16.mxu0 0
        %611 = vmatpush1.bf16.msra.mxu0 0
        %612 = vmatprep.mubr.bf16.mxu0 0
        %613 = vmatmul.mubr.bf16.gmra.mrb[0].mxu0 %v531
        %v614 = vpop.f32.mrb[0].mxu0
        %v615 = vadd.f32 0.0, %v614
        %v616 = vpop.f32.mrb[0].mxu0
        %v617 = vpop.f32.mrb[0].mxu0
        %v618 = vpop.f32.mrb[0].mxu0
        %619 = vdwg.mxu0
        %v620 = vadd.f32 %v530, %v615
        %621 = vst [vmem:[#allocation2] sm:$0xff] %v620
        %p622 = scmp.eq.s32.totalorder %s24, 2
        // Predicated region
        $region85: #{tpu_custom_call.1} parent=75 // pred_check
          %p623 = pneg %p622
        $region86: #{tpu_custom_call.1} parent=75 // pred_check_branch
          %625 = sbr.rel (%p623) target = $region88
        $region87: #{tpu_custom_call.1} parent=75 // pred_region
          %v626 = vld [vmem:[#allocation2] sm:$0xff]
          %627 = vst [vmem:[%s395] sm:$0xff] %v626
        $region88: #{tpu_custom_call.1} parent=75 // pred_fallthru
          _
        %s628 = sand.u32 %s128, 1
        %s629 = scalar_lea.sflag [#allocation5], %s628
        %s630 = sand.u32 %s128, 1
        %s631 = smul.addr %s630, 8
        %s632 = scalar_lea.vmem [#allocation4], %s631
        // Predicated region
        $region89: #{tpu_custom_call.1} parent=75 // pred_check
          %p633 = pneg %p138
        $region90: #{tpu_custom_call.1} parent=75 // pred_check_branch
          %635 = sbr.rel (%p633) target = $region92
        $region91: #{tpu_custom_call.1} parent=75 // pred_region
          %s637 = ssub.s32 128, 128
          %638 = vsyncadd %s629, %s637
          %s639 = smul.addr %s22, 2
          %s640 = sadd.s32 %s23, %s639
          %s641 = smul.addr %s640, 128
          %s642 = scalar_lea.hbm %s3, %s641
          %s644 = sshll.u32 %s632, 4
          %s645 = int_to_ptr.vmem [resolvable:$true] %s644
          %647 = dma.vmem_to_hbm [thread:$0]  %s645, 128, %s642, %s629
        $region92: #{tpu_custom_call.1} parent=75 // pred_fallthru
          _
      $region76: #{tpu_custom_call.1} parent=5 // pred_fallthru
        _
      %p648 = scmp.le.s32.totalorder 2, %s12
      // Predicated region
      $region93: #{tpu_custom_call.1} parent=5 // pred_check
        %p649 = pneg %p648
      $region94: #{tpu_custom_call.1} parent=5 // pred_check_branch
        %651 = sbr.rel (%p649) target = $region96
      $region95: #{tpu_custom_call.1} parent=5 // pred_region
        %s652 = ssub.s32 %s12, 2
        // Predicated region
        $region97: #{tpu_custom_call.1} parent=95 // pred_check
          %p653 = pneg %p144
        $region98: #{tpu_custom_call.1} parent=95 // pred_check_branch
          %655 = sbr.rel (%p653) target = $region100
        $region99: #{tpu_custom_call.1} parent=95 // pred_region
          %s656 = sand.u32 %s129, 1
          %s657 = scalar_lea.sflag [#allocation5], %s656
          %s658 = sand.u32 %s129, 1
          %s659 = smul.addr %s658, 8
          %s660 = scalar_lea.vmem [#allocation4], %s659
          %661 = dma.done %s657, 128
        $region100: #{tpu_custom_call.1} parent=95 // pred_fallthru
          _
      $region96: #{tpu_custom_call.1} parent=5 // pred_fallthru
        _
    $region6: #{tpu_custom_call.1} parent=1 // loop_footer
      %s16 = sadd.s32 1, %s12
    $region7: #{tpu_custom_call.1} parent=1 // loop_footer_branch
      %11 = sbr.rel target = $region3
    $region8: #{tpu_custom_call.1} parent=1 // loop_exit
      _
    %662 = vsyncpa [#allocation5], 1
    %s663 = scalar_lea.sflag [#allocation5], 1
    %664 = vsyncpa %s663, 1

</llo_original>
